<compile_context>
chip_gen: v7x
topology: tpu7x:2x2x1
jax: 0.10.0
libtpu: 0.0.40
codegen_flags: <defaults>
</compile_context>

<pallas_src>
import functools

import jax
import jax.numpy as jnp
from jax.experimental import pallas as pl
from jax.experimental.pallas import tpu as pltpu


def _round_up(x: int, m: int) -> int:
    return ((x + m - 1) // m) * m


def _bytes(dt) -> int:
    return jnp.dtype(dt).itemsize


@functools.cache
def _buffered_one_supported() -> bool:
    """One-time feature probe for pipeline_mode=pl.Buffered(1) (single-buffered
    resident weights). Keeps the production kernel call free of blanket
    try/except so real OOM / compile errors are never masked."""
    def _copy(x_ref, o_ref):
        o_ref[...] = x_ref[...]

    try:
        spec = pl.BlockSpec((8, 128), lambda i: (0, 0),
                            pipeline_mode=pl.Buffered(1))
        fn = pl.pallas_call(
            _copy,
            out_shape=jax.ShapeDtypeStruct((8, 128), jnp.float32),
            grid_spec=pltpu.PrefetchScalarGridSpec(
                num_scalar_prefetch=0,
                grid=(1,),
                in_specs=[spec],
                out_specs=pl.BlockSpec((8, 128), lambda i: (0, 0)),
            ),
        )
        jax.block_until_ready(fn(jnp.zeros((8, 128), jnp.float32)))
        return True
    except Exception:  # constructor or lowering rejects Buffered(1)
        return False


def _text_projection_kernel(x_ref, w1_ref, b1_ref, w2_ref, b2_ref, o_ref, h_ref):
    # x_ref : (tm, Cp)  caption tile, already in MXU dtype
    # w1_ref: (Cp, Hp)  linear_1 weight^T (resident across the whole grid)
    # b1_ref: (1, Hp)   f32
    # w2_ref: (Hp, tn)  linear_2 weight^T column tile (streamed over j)
    # b2_ref: (1, tn)   f32
    # o_ref : (tm, tn)
    # h_ref : (tm, Hp)  VMEM scratch holding SiLU(x @ W1^T + b1) for this m tile
    j = pl.program_id(1)

    @pl.when(j == 0)
    def _():
        h = jnp.dot(x_ref[...], w1_ref[...], preferred_element_type=jnp.float32)
        h = h + b1_ref[...]
        h = h * jax.nn.sigmoid(h)                       # SiLU in f32
        h_ref[...] = h.astype(h_ref.dtype)

    out = jnp.dot(h_ref[...], w2_ref[...], preferred_element_type=jnp.float32)
    o_ref[...] = (out + b2_ref[...]).astype(o_ref.dtype)


def prepare_text_projection_params(w1, b1, w2, b2, *, mxu_dtype=jnp.bfloat16):
    """Hoists weight transposes / casts / padding out of the forward path.

    w1: [H, C], b1: [H], w2: [H, H], b2: [H]  (PyTorch nn.Linear layout).
    Call once at model load; reuse the returned dict for every forward call.
    """
    H, C = w1.shape
    Cp = _round_up(C, 128)     # lane-dense feature dims
    Hp = _round_up(H, 128)

    w1_t = jnp.zeros((Cp, Hp), mxu_dtype).at[:C, :H].set(w1.T.astype(mxu_dtype))
    w2_t = jnp.zeros((Hp, Hp), mxu_dtype).at[:H, :H].set(w2.T.astype(mxu_dtype))
    b1_p = jnp.zeros((1, Hp), jnp.float32).at[:, :H].set(
        b1.astype(jnp.float32).reshape(1, H))
    b2_p = jnp.zeros((1, Hp), jnp.float32).at[:, :H].set(
        b2.astype(jnp.float32).reshape(1, H))

    return {"w1_t": w1_t, "b1": b1_p, "w2_t": w2_t, "b2": b2_p,
            "in_channels": C, "hidden_size": H}


def text_projection(caption, params, *, tile_m=512, tile_n=None):
    """caption: [B, L, C] -> [B, L, H] using pre-prepared params."""
    B, L, C = caption.shape
    assert C == params["in_channels"]
    H = params["hidden_size"]
    w1_t, b1 = params["w1_t"], params["b1"]
    w2_t, b2 = params["w2_t"], params["b2"]
    Cp, Hp = w1_t.shape
    out_dtype = caption.dtype
    mxu_dtype = w1_t.dtype

    M = B * L
    x2d = caption.reshape(M, C)
    if x2d.dtype != mxu_dtype:
        x2d = x2d.astype(mxu_dtype)      # halves x DMA bytes; no in-kernel cast
    if Cp != C:
        x2d = jnp.pad(x2d, ((0, 0), (0, Cp - C)))

    # m tiling: big tiles amortize per-grid-step overhead; for small M make sure
    # the "parallel" m axis still has >= 2 steps so both v7x TCs get work.
    if M > 2 * tile_m:
        tm = tile_m
    else:
        tm = max(16, _round_up((M + 1) // 2, 16))

    # n tiling candidates: multiples of 128 that divide Hp, largest first
    # (largest => W2 fully resident, single n step).
    tn_cands = [t for t in range(Hp, 0, -128) if Hp % t == 0]
    if tile_n is not None:
        tn_cands = [t for t in tn_cands if t <= max(128, tile_n)] or [128]
    tn = tn_cands[0]

    xb, wb, ob = _bytes(x2d.dtype), _bytes(mxu_dtype), _bytes(out_dtype)
    w1_bufs = 1 if _buffered_one_supported() else 2

    def vmem_estimate(tm_, tn_):
        return (2 * tm_ * Cp * xb                        # x tile (double-buffered)
                + w1_bufs * (Cp * Hp * wb + Hp * 4)      # resident W1^T + b1
                + 2 * (Hp * tn_ * wb + tn_ * 4)          # streamed W2^T tile + b2
                + 2 * tm_ * tn_ * ob                     # output tile
                + tm_ * Hp * wb                          # hidden scratch
                + tm_ * Hp * 4 + tm_ * tn_ * 4)          # f32 matmul results

    # Per-generation VMEM budget (v7x: 64 MiB/TC, v5e/v6e: 128 MiB) with
    # headroom left for Mosaic-internal scratch / relayouts.
    try:
        vmem_cap = int(pltpu.get_tpu_info().vmem_capacity_bytes)
    except Exception:
        vmem_cap = 128 << 20
    cap = max(32 << 20, min(vmem_cap - (16 << 20), 112 << 20))
    headroom = 8 << 20

    # Shrink the W2 column tile first, then the m tile, until we fit the budget.
    while vmem_estimate(tm, tn) + headroom > cap:
        smaller_tn = [t for t in tn_cands if t < tn]
        if smaller_tn:
            tn = smaller_tn[0]
        elif tm > 64:
            tm = max(64, _round_up(tm // 2, 16))
        else:
            break

    n_m = pl.cdiv(M, tm)
    Mp = n_m * tm
    if Mp != M:
        x2d = jnp.pad(x2d, ((0, Mp - M), (0, 0)))
    n_n = Hp // tn

    vmem_limit = int(max(32 << 20, min(cap, vmem_estimate(tm, tn) + headroom)))

    w_kw = {"pipeline_mode": pl.Buffered(1)} if w1_bufs == 1 else {}

    cost = pl.CostEstimate(
        flops=2 * Mp * Hp * (Cp + Hp),
        transcendentals=Mp * Hp,                         # sigmoid in SiLU
        bytes_accessed=(Mp * Cp * xb + Cp * Hp * wb + n_m * Hp * Hp * wb
                        + 2 * Hp * 4 + Mp * Hp * ob),
    )

    out2d = pl.pallas_call(
        _text_projection_kernel,
        out_shape=jax.ShapeDtypeStruct((Mp, Hp), out_dtype),
        grid_spec=pltpu.PrefetchScalarGridSpec(
            num_scalar_prefetch=0,
            grid=(n_m, n_n),
            in_specs=[
                pl.BlockSpec((tm, Cp), lambda i, j: (i, 0)),           # x tile (reused over j)
                pl.BlockSpec((Cp, Hp), lambda i, j: (0, 0), **w_kw),   # W1^T resident
                pl.BlockSpec((1, Hp), lambda i, j: (0, 0), **w_kw),    # b1 resident
                pl.BlockSpec((Hp, tn), lambda i, j: (0, j)),           # W2^T column stream
                pl.BlockSpec((1, tn), lambda i, j: (0, j)),            # b2 column stream
            ],
            out_specs=pl.BlockSpec((tm, tn), lambda i, j: (i, j)),
            scratch_shapes=[pltpu.VMEM((tm, Hp), mxu_dtype)],          # hidden cache
        ),
        compiler_params=pltpu.CompilerParams(
            dimension_semantics=("parallel", "arbitrary"),
            vmem_limit_bytes=vmem_limit,
        ),
        cost_estimate=cost,
    )(x2d, w1_t, b1, w2_t, b2)

    return out2d[:M, :H].reshape(B, L, H)


def _reference(caption, w1, b1, w2, b2):
    h = jnp.einsum("blc,hc->blh", caption, w1) + b1
    h = h * jax.nn.sigmoid(h)
    return jnp.einsum("blh,oh->blo", h, w2) + b2


def _make_case(key, B, L, C, H, dtype=jnp.float32):
    k_x, k_w1, k_b1, k_w2, k_b2 = jax.random.split(key, 5)
    caption = jax.random.normal(k_x, (B, L, C), dtype=dtype)
    bound1 = 1.0 / (C ** 0.5)
    bound2 = 1.0 / (H ** 0.5)
    w1 = jax.random.uniform(k_w1, (H, C), dtype, -bound1, bound1)
    b1 = jax.random.uniform(k_b1, (H,), dtype, -bound1, bound1)
    w2 = jax.random.uniform(k_w2, (H, H), dtype, -bound2, bound2)
    b2 = jax.random.uniform(k_b2, (H,), dtype, -bound2, bound2)
    return caption, (w1, b1, w2, b2)


if __name__ == "__main__":
    key = jax.random.PRNGKey(0)
    k1, k2 = jax.random.split(key)

    # Case 1: tiny module-consistent shapes (B=2, L=8, C=32, H=32).
    caption, (w1, b1, w2, b2) = _make_case(k1, 2, 8, 32, 32)
    ref = _reference(caption, w1, b1, w2, b2)

    # f32 MXU path: tight check of the fused math (incl. padding correctness).
    params_f32 = prepare_text_projection_params(w1, b1, w2, b2,
                                                mxu_dtype=jnp.float32)
    out_f32 = jax.block_until_ready(text_projection(caption, params_f32))
    assert out_f32.shape == (2, 8, 32)
    assert jnp.allclose(out_f32, ref, atol=1e-5, rtol=1e-5), "f32 mismatch (tiny)"

    # bf16 MXU path (default / production): f32 accumulate, looser tolerance.
    params_bf16 = prepare_text_projection_params(w1, b1, w2, b2)
    out_bf16 = jax.block_until_ready(text_projection(caption, params_bf16))
    assert out_bf16.shape == (2, 8, 32)
    assert jnp.allclose(out_bf16, ref, atol=3e-2, rtol=3e-2), "bf16 mismatch (tiny)"

    # Case 2: ragged M, padded C/H, multiple m tiles AND multiple streamed-W2
    # n tiles (exercises the hidden-scratch reuse across j and masked edges).
    caption2, (w1b, b1b, w2b, b2b) = _make_case(k2, 2, 100, 160, 288)
    ref2 = _reference(caption2, w1b, b1b, w2b, b2b)
    params2 = prepare_text_projection_params(w1b, b1b, w2b, b2b,
                                             mxu_dtype=jnp.float32)
    out2 = jax.block_until_ready(
        text_projection(caption2, params2, tile_m=64, tile_n=128))
    assert out2.shape == (2, 100, 288)
    assert jnp.allclose(out2, ref2, atol=5e-4, rtol=5e-4), "f32 mismatch (tiled)"

    print("KERNEL_OK")
</pallas_src>

<mosaic_0001>
module attributes {stable_mosaic.version = 11 : i64} {
  func.func @_copy(%arg0: i32, %arg1: memref<8x128xf32, #tpu.memory_space<vmem>>, %arg2: memref<8x128xf32, #tpu.memory_space<vmem>>) attributes {dimension_semantics = [#tpu.dimension_semantics<arbitrary>], iteration_bounds = array<i64: 1>, scalar_prefetch = 0 : i64, scratch_operands = 0 : i64, tpu.core_type = #tpu.core_type<tc>, window_params = [{pipeline_mode = #tpu.pipeline_mode<synchronous>, transform_indices = @transform_0, window_bounds = array<i64: 8, 128>}, {pipeline_mode = #tpu.pipeline_mode<synchronous>, transform_indices = @transform_1, window_bounds = array<i64: 8, 128>}]} {
    %c0 = arith.constant 0 : index
    %c0_0 = arith.constant 0 : index
    %0 = vector.load %arg1[%c0, %c0_0] : memref<8x128xf32, #tpu.memory_space<vmem>>, vector<8x128xf32>
    %c0_1 = arith.constant 0 : index
    %c0_2 = arith.constant 0 : index
    %1 = vector.load %arg2[%c0_1, %c0_2] : memref<8x128xf32, #tpu.memory_space<vmem>>, vector<8x128xf32>
    tpu.vector_store %arg2[%c0_1, %c0_2], %0 {strides = array<i32>} : memref<8x128xf32, #tpu.memory_space<vmem>>, vector<8x128xf32>,
    return
  }
  func.func @transform_0(%arg0: i32) -> (i32, i32) {
    %c0_i32 = arith.constant 0 : i32
    %c0_i32_0 = arith.constant 0 : i32
    %c0_i32_1 = arith.constant 0 : i32
    return %c0_i32, %c0_i32_0 : i32, i32
  }
  func.func @transform_1(%arg0: i32) -> (i32, i32) {
    %c0_i32 = arith.constant 0 : i32
    %c0_i32_0 = arith.constant 0 : i32
    %c0_i32_1 = arith.constant 0 : i32
    return %c0_i32, %c0_i32_0 : i32, i32
  }
}

module attributes {stable_mosaic.version = 11 : i64} {
  func.func @_text_projection_kernel(%arg0: i32, %arg1: i32, %arg2: memref<16x128xf32, #tpu.memory_space<vmem>>, %arg3: memref<128x128xf32, #tpu.memory_space<vmem>>, %arg4: memref<1x128xf32, #tpu.memory_space<vmem>>, %arg5: memref<128x128xf32, #tpu.memory_space<vmem>>, %arg6: memref<1x128xf32, #tpu.memory_space<vmem>>, %arg7: memref<16x128xf32, #tpu.memory_space<vmem>>, %arg8: memref<16x128xf32, #tpu.memory_space<vmem>>) attributes {dimension_semantics = [#tpu.dimension_semantics<parallel>, #tpu.dimension_semantics<arbitrary>], iteration_bounds = array<i64: 1, 1>, scalar_prefetch = 0 : i64, scratch_operands = 1 : i64, tpu.core_type = #tpu.core_type<tc>, window_params = [{transform_indices = @transform_0, window_bounds = array<i64: 16, 128>}, {pipeline_mode = #tpu.pipeline_mode<synchronous>, transform_indices = @transform_1, window_bounds = array<i64: 128, 128>}, {pipeline_mode = #tpu.pipeline_mode<synchronous>, transform_indices = @transform_2, window_bounds = array<i64: 1, 128>}, {transform_indices = @transform_3, window_bounds = array<i64: 128, 128>}, {transform_indices = @transform_4, window_bounds = array<i64: 1, 128>}, {transform_indices = @transform_5, window_bounds = array<i64: 16, 128>}]} {
    %c0_i32 = arith.constant 0 : i32
    %0 = arith.cmpi eq, %arg1, %c0_i32 : i32
    %1 = arith.extui %0 : i1 to i32
    %c0_i32_0 = arith.constant 0 : i32
    %2 = arith.cmpi ne, %1, %c0_i32_0 : i32
    scf.if %2 {
      %c0_8 = arith.constant 0 : index
      %c0_9 = arith.constant 0 : index
      %10 = vector.load %arg2[%c0_8, %c0_9] : memref<16x128xf32, #tpu.memory_space<vmem>>, vector<16x128xf32>
      %c0_10 = arith.constant 0 : index
      %c0_11 = arith.constant 0 : index
      %11 = vector.load %arg3[%c0_10, %c0_11] : memref<128x128xf32, #tpu.memory_space<vmem>>, vector<128x128xf32>
      %cst_12 = arith.constant dense<0.000000e+00> : vector<16x128xf32>
      %12 = tpu.matmul %10, %11, %cst_12 {dimension_numbers = #tpu.dot_dimension_numbers<[1], [0], [0], [1], [0, 0, 1, 1], [], []>} : vector<16x128xf32>, vector<128x128xf32>, vector<16x128xf32> -> vector<16x128xf32>
      %c0_13 = arith.constant 0 : index
      %c0_14 = arith.constant 0 : index
      %13 = vector.load %arg4[%c0_13, %c0_14] : memref<1x128xf32, #tpu.memory_space<vmem>>, vector<1x128xf32>
      %14 = vector.broadcast %13 : vector<1x128xf32> to vector<16x128xf32>
      %15 = arith.addf %12, %14 : vector<16x128xf32>
      %16 = arith.negf %15 : vector<16x128xf32>
      %17 = math.exp %16 : vector<16x128xf32>
      %cst_15 = arith.constant 1.000000e+00 : f32
      %18 = vector.broadcast %cst_15 : f32 to vector<16x128xf32>
      %19 = arith.addf %18, %17 : vector<16x128xf32>
      %20 = arith.divf %18, %19 : vector<16x128xf32>
      %21 = arith.mulf %15, %20 : vector<16x128xf32>
      %c0_16 = arith.constant 0 : index
      %c0_17 = arith.constant 0 : index
      %22 = vector.load %arg8[%c0_16, %c0_17] : memref<16x128xf32, #tpu.memory_space<vmem>>, vector<16x128xf32>
      tpu.vector_store %arg8[%c0_16, %c0_17], %21 {strides = array<i32>} : memref<16x128xf32, #tpu.memory_space<vmem>>, vector<16x128xf32>,
    } else {
    }
    %c0 = arith.constant 0 : index
    %c0_1 = arith.constant 0 : index
    %3 = vector.load %arg8[%c0, %c0_1] : memref<16x128xf32, #tpu.memory_space<vmem>>, vector<16x128xf32>
    %c0_2 = arith.constant 0 : index
    %c0_3 = arith.constant 0 : index
    %4 = vector.load %arg5[%c0_2, %c0_3] : memref<128x128xf32, #tpu.memory_space<vmem>>, vector<128x128xf32>
    %cst = arith.constant dense<0.000000e+00> : vector<16x128xf32>
    %5 = tpu.matmul %3, %4, %cst {dimension_numbers = #tpu.dot_dimension_numbers<[1], [0], [0], [1], [0, 0, 1, 1], [], []>} : vector<16x128xf32>, vector<128x128xf32>, vector<16x128xf32> -> vector<16x128xf32>
    %c0_4 = arith.constant 0 : index
    %c0_5 = arith.constant 0 : index
    %6 = vector.load %arg6[%c0_4, %c0_5] : memref<1x128xf32, #tpu.memory_space<vmem>>, vector<1x128xf32>
    %7 = vector.broadcast %6 : vector<1x128xf32> to vector<16x128xf32>
    %8 = arith.addf %5, %7 : vector<16x128xf32>
    %c0_6 = arith.constant 0 : index
    %c0_7 = arith.constant 0 : index
    %9 = vector.load %arg7[%c0_6, %c0_7] : memref<16x128xf32, #tpu.memory_space<vmem>>, vector<16x128xf32>
    tpu.vector_store %arg7[%c0_6, %c0_7], %8 {strides = array<i32>} : memref<16x128xf32, #tpu.memory_space<vmem>>, vector<16x128xf32>,
    return
  }
  func.func @transform_0(%arg0: i32, %arg1: i32) -> (i32, i32) {
    %c0_i32 = arith.constant 0 : i32
    %c0_i32_0 = arith.constant 0 : i32
    return %arg0, %c0_i32 : i32, i32
  }
  func.func @transform_1(%arg0: i32, %arg1: i32) -> (i32, i32) {
    %c0_i32 = arith.constant 0 : i32
    %c0_i32_0 = arith.constant 0 : i32
    %c0_i32_1 = arith.constant 0 : i32
    return %c0_i32, %c0_i32_0 : i32, i32
  }
  func.func @transform_2(%arg0: i32, %arg1: i32) -> (i32, i32) {
    %c0_i32 = arith.constant 0 : i32
    %c0_i32_0 = arith.constant 0 : i32
    %c0_i32_1 = arith.constant 0 : i32
    return %c0_i32, %c0_i32_0 : i32, i32
  }
  func.func @transform_3(%arg0: i32, %arg1: i32) -> (i32, i32) {
    %c0_i32 = arith.constant 0 : i32
    %c0_i32_0 = arith.constant 0 : i32
    return %c0_i32, %arg1 : i32, i32
  }
  func.func @transform_4(%arg0: i32, %arg1: i32) -> (i32, i32) {
    %c0_i32 = arith.constant 0 : i32
    %c0_i32_0 = arith.constant 0 : i32
    return %c0_i32, %arg1 : i32, i32
  }
  func.func @transform_5(%arg0: i32, %arg1: i32) -> (i32, i32) {
    %c0_i32 = arith.constant 0 : i32
    return %arg0, %arg1 : i32, i32
  }
}

</mosaic_0001>

<llo_original>
// kernel: tpu_custom_call.1
$region0: #{tpu_custom_call.1}
  #allocation0 [shape = 'u32[]', space=smem, size = 0x4, offset = 0x4, fixed_abs, tag = 'smem constant byte address 0x4 - core index']
  #allocation1 [shape = 'u32[144,128]{1,0:T(1,128)}', space=vmem, size = 0x12000, scoped, tag = 'internal scratch']
  %s0 = inlined_call_operand.hbm [shape: f32[8,128], index: 0, kind: input, shape index: {}]
  %s1 = inlined_call_operand.hbm [shape: f32[8,128], index: 1, kind: output, shape index: {}]
  %s2 = sld [smem:[#allocation0]]
  $region18: #{tpu_custom_call.1} parent=0
    _
  %s4 = ssub.s32 1, %s2
  %s5 = scalar_select 0, %s4, %s2
  $region1: #{tpu_custom_call.1} parent=0
    #allocation2 [shape = 'u8[4096]{0}', space=vmem, size = 0x1000, scoped, tag = 'input window, operand 0, single buffered']
    #allocation3 [shape = 's32[1]{0}', space=sflag, size = 0x4, scoped, tag = 'scoped memory for tpu_custom_call.1']
    #allocation4 [shape = 's32[1]{0}', space=sflag, size = 0x4, scoped, tag = 'scoped memory for tpu_custom_call.1']
    #allocation5 [shape = 'u8[4096]{0}', space=vmem, size = 0x1000, scoped, tag = 'output window, operand 0, single buffered']
    %6 = vsyncpa [#allocation3], 0
    %7 = vsyncpa [#allocation4], 0
    // Predicated region
    $region2: #{tpu_custom_call.1} parent=1 // pred_check
      _
    $region3: #{tpu_custom_call.1} parent=1 // pred_check_branch
      %9 = sbr.rel (0) target = $region5
    $region4: #{tpu_custom_call.1} parent=1 // pred_region
      %s11 = ssub.s32 128, 128
      %12 = vsyncadd [#allocation3], %s11
      %s14 = sshll.u32 [#allocation2], 4
      %s15 = int_to_ptr.vmem [resolvable:$true] %s14
      %17 = dma.hbm_to_vmem [thread:$0]  %s0, 128, %s15, [#allocation3]
    $region5: #{tpu_custom_call.1} parent=1 // pred_fallthru
      _
    // Predicated region
    $region6: #{tpu_custom_call.1} parent=1 // pred_check
      _
    $region7: #{tpu_custom_call.1} parent=1 // pred_check_branch
      %19 = sbr.rel (0) target = $region9
    $region8: #{tpu_custom_call.1} parent=1 // pred_region
      %20 = dma.done [#allocation3], 128
    $region9: #{tpu_custom_call.1} parent=1 // pred_fallthru
      _
    %v21 = vld [vmem:[#allocation2] sm:$0xff]
    %22 = vst [vmem:[#allocation5] sm:$0xff] %v21
    // Predicated region
    $region10: #{tpu_custom_call.1} parent=1 // pred_check
      _
    $region11: #{tpu_custom_call.1} parent=1 // pred_check_branch
      %24 = sbr.rel (0) target = $region13
    $region12: #{tpu_custom_call.1} parent=1 // pred_region
      %s26 = ssub.s32 128, 128
      %27 = vsyncadd [#allocation4], %s26
      %s29 = sshll.u32 [#allocation5], 4
      %s30 = int_to_ptr.vmem [resolvable:$true] %s29
      %32 = dma.vmem_to_hbm [thread:$0]  %s30, 128, %s1, [#allocation4]
    $region13: #{tpu_custom_call.1} parent=1 // pred_fallthru
      _
    // Predicated region
    $region14: #{tpu_custom_call.1} parent=1 // pred_check
      _
    $region15: #{tpu_custom_call.1} parent=1 // pred_check_branch
      %34 = sbr.rel (0) target = $region17
    $region16: #{tpu_custom_call.1} parent=1 // pred_region
      %35 = dma.done [#allocation4], 128
    $region17: #{tpu_custom_call.1} parent=1 // pred_fallthru
      _
    %36 = vsyncpa [#allocation3], 1
    %37 = vsyncpa [#allocation4], 1

// kernel: tpu_custom_call.1
$region0: #{tpu_custom_call.1}
  #allocation0 [shape = 'u32[]', space=smem, size = 0x4, offset = 0x4, fixed_abs, tag = 'smem constant byte address 0x4 - core index']
  #allocation1 [shape = 'u32[144,128]{1,0:T(1,128)}', space=vmem, size = 0x12000, scoped, tag = 'internal scratch']
  #allocation2 [shape = 'f32[16,128]{1,0:T(8,128)}', space=vmem, size = 0x2000, scoped, tag = 'scratch operand']
  %s0 = inlined_call_operand.hbm [shape: f32[16,128], index: 0, kind: input, shape index: {}]
  %s1 = inlined_call_operand.hbm [shape: f32[128,128], index: 1, kind: input, shape index: {}]
  %s2 = inlined_call_operand.vmem [shape: f32[1,128], index: 2, kind: input, shape index: {}]
  %s3 = inlined_call_operand.hbm [shape: f32[128,128], index: 3, kind: input, shape index: {}]
  %s4 = inlined_call_operand.vmem [shape: f32[1,128], index: 4, kind: input, shape index: {}]
  %s5 = inlined_call_operand.hbm [shape: f32[16,128], index: 5, kind: output, shape index: {}]
  %s6 = sld [smem:[#allocation0]]
  $region46: #{tpu_custom_call.1} parent=0
    _
  %s8 = ssub.s32 1, %s6
  %s9 = scalar_select 0, %s8, %s6
  $region1: #{tpu_custom_call.1} parent=0
    #allocation3 [shape = 'u8[8192]{0}', space=vmem, size = 0x2000, scoped, tag = 'input window, operand 0, single buffered']
    #allocation4 [shape = 's32[1]{0}', space=sflag, size = 0x4, scoped, tag = 'scoped memory for tpu_custom_call.1']
    #allocation5 [shape = 's32[1]{0}', space=sflag, size = 0x4, scoped, tag = 'scoped memory for tpu_custom_call.1']
    #allocation6 [shape = 'u8[65536]{0}', space=vmem, size = 0x10000, scoped, tag = 'input window, operand 1, single buffered']
    #allocation7 [shape = 's32[1]{0}', space=sflag, size = 0x4, scoped, tag = 'scoped memory for tpu_custom_call.1']
    #allocation8 [shape = 'u8[65536]{0}', space=vmem, size = 0x10000, scoped, tag = 'input window, operand 3, single buffered']
    #allocation9 [shape = 'u8[8192]{0}', space=vmem, size = 0x2000, scoped, tag = 'output window, operand 0, single buffered']
    %10 = vsyncpa [#allocation4], 0
    %11 = vsyncpa [#allocation7], 0
    %12 = vsyncpa [#allocation5], 0
    // Predicated region
    $region2: #{tpu_custom_call.1} parent=1 // pred_check
      _
    $region3: #{tpu_custom_call.1} parent=1 // pred_check_branch
      %14 = sbr.rel (0) target = $region5
    $region4: #{tpu_custom_call.1} parent=1 // pred_region
      %s16 = ssub.s32 256, 256
      %17 = vsyncadd [#allocation4], %s16
      %s18 = sshll.u32 [#allocation3], 4
      %s19 = int_to_ptr.vmem [resolvable:$true] %s18
      %24 = dma.hbm_to_vmem [thread:$0]  %s0, 256, %s19, [#allocation4], 128, 128, 8
    $region5: #{tpu_custom_call.1} parent=1 // pred_fallthru
      _
    // Predicated region
    $region6: #{tpu_custom_call.1} parent=1 // pred_check
      _
    $region7: #{tpu_custom_call.1} parent=1 // pred_check_branch
      %26 = sbr.rel (0) target = $region9
    $region8: #{tpu_custom_call.1} parent=1 // pred_region
      %s28 = ssub.s32 2048, 2048
      %29 = vsyncadd [#allocation7], %s28
      %s30 = sshll.u32 [#allocation6], 4
      %s31 = int_to_ptr.vmem [resolvable:$true] %s30
      %36 = dma.hbm_to_vmem [thread:$0]  %s1, 2048, %s31, [#allocation7], 128, 128, 8
    $region9: #{tpu_custom_call.1} parent=1 // pred_fallthru
      _
    // Predicated region
    $region10: #{tpu_custom_call.1} parent=1 // pred_check
      _
    $region11: #{tpu_custom_call.1} parent=1 // pred_check_branch
      %38 = sbr.rel (0) target = $region13
    $region12: #{tpu_custom_call.1} parent=1 // pred_region
      _
    $region13: #{tpu_custom_call.1} parent=1 // pred_fallthru
      _
    // Predicated region
    $region14: #{tpu_custom_call.1} parent=1 // pred_check
      _
    $region15: #{tpu_custom_call.1} parent=1 // pred_check_branch
      %40 = sbr.rel (0) target = $region17
    $region16: #{tpu_custom_call.1} parent=1 // pred_region
      %s42 = ssub.s32 2048, 2048
      %43 = vsyncadd [#allocation7], %s42
      %s44 = sshll.u32 [#allocation8], 4
      %s45 = int_to_ptr.vmem [resolvable:$true] %s44
      %50 = dma.hbm_to_vmem [thread:$0]  %s3, 2048, %s45, [#allocation7], 128, 128, 8
    $region17: #{tpu_custom_call.1} parent=1 // pred_fallthru
      _
    // Predicated region
    $region18: #{tpu_custom_call.1} parent=1 // pred_check
      _
    $region19: #{tpu_custom_call.1} parent=1 // pred_check_branch
      %52 = sbr.rel (0) target = $region21
    $region20: #{tpu_custom_call.1} parent=1 // pred_region
      _
    $region21: #{tpu_custom_call.1} parent=1 // pred_fallthru
      _
    // Predicated region
    $region22: #{tpu_custom_call.1} parent=1 // pred_check
      _
    $region23: #{tpu_custom_call.1} parent=1 // pred_check_branch
      %54 = sbr.rel (0) target = $region25
    $region24: #{tpu_custom_call.1} parent=1 // pred_region
      %55 = dma.done [#allocation4], 256
    $region25: #{tpu_custom_call.1} parent=1 // pred_fallthru
      _
    // Predicated region
    $region26: #{tpu_custom_call.1} parent=1 // pred_check
      _
    $region27: #{tpu_custom_call.1} parent=1 // pred_check_branch
      %57 = sbr.rel (0) target = $region29
    $region28: #{tpu_custom_call.1} parent=1 // pred_region
      %58 = dma.done [#allocation7], 2048
    $region29: #{tpu_custom_call.1} parent=1 // pred_fallthru
      _
    // Predicated region
    $region30: #{tpu_custom_call.1} parent=1 // pred_check
      _
    $region31: #{tpu_custom_call.1} parent=1 // pred_check_branch
      %60 = sbr.rel (0) target = $region33
    $region32: #{tpu_custom_call.1} parent=1 // pred_region
      %61 = dma.done [#allocation7], 2048
    $region33: #{tpu_custom_call.1} parent=1 // pred_fallthru
      _
    %p62 = scmp.eq.s32.totalorder 0, 0
    // Predicated region
    $region34: #{tpu_custom_call.1} parent=1 // pred_check
      %p63 = pneg %p62
    $region35: #{tpu_custom_call.1} parent=1 // pred_check_branch
      %65 = sbr.rel (%p63) target = $region37
    $region36: #{tpu_custom_call.1} parent=1 // pred_region
      %v66 = vld [vmem:[#allocation3] sm:$0xff]
      %v67 = vld [vmem:[#allocation3 + $0x8] sm:$0xff]
      %v68 = vld [vmem:[#allocation6] sm:$0xff]
      %v69 = vld [vmem:[#allocation6 + $0x8] sm:$0xff]
      %v70 = vld [vmem:[#allocation6 + $0x10] sm:$0xff]
      %v71 = vld [vmem:[#allocation6 + $0x18] sm:$0xff]
      %v72 = vld [vmem:[#allocation6 + $0x20] sm:$0xff]
      %v73 = vld [vmem:[#allocation6 + $0x28] sm:$0xff]
      %v74 = vld [vmem:[#allocation6 + $0x30] sm:$0xff]
      %v75 = vld [vmem:[#allocation6 + $0x38] sm:$0xff]
      %v76 = vld [vmem:[#allocation6 + $0x40] sm:$0xff]
      %v77 = vld [vmem:[#allocation6 + $0x48] sm:$0xff]
      %v78 = vld [vmem:[#allocation6 + $0x50] sm:$0xff]
      %v79 = vld [vmem:[#allocation6 + $0x58] sm:$0xff]
      %v80 = vld [vmem:[#allocation6 + $0x60] sm:$0xff]
      %v81 = vld [vmem:[#allocation6 + $0x68] sm:$0xff]
      %v82 = vld [vmem:[#allocation6 + $0x70] sm:$0xff]
      %v83 = vld [vmem:[#allocation6 + $0x78] sm:$0xff]
      %v84 = vld [vmem:[%s2] sm:$0x1]
      %v86 = vlaneseq
      %v87 = vshrl.u32 %v86, 7
      %v88 = vsub.s32 0, %v87
      %v89 = vrot.slane %v84, %v88
      %91 = vmatprep.subr.mxu0 0.0
      %92 = vmatpush1.msra.mxu0 %v68
      %93 = vmatprep.subr.mxu0 0.0
      %94 = vmatpush1.msra.mxu0 %v69
      %95 = vmatprep.subr.mxu0 0.0
      %96 = vmatpush1.msra.mxu0 %v70
      %97 = vmatprep.subr.mxu0 0.0
      %98 = vmatpush1.msra.mxu0 %v71
      %99 = vmatprep.subr.mxu0 0.0
      %100 = vmatpush1.msra.mxu0 %v72
      %101 = vmatprep.subr.mxu0 0.0
      %102 = vmatpush1.msra.mxu0 %v73
      %103 = vmatprep.subr.mxu0 0.0
      %104 = vmatpush1.msra.mxu0 %v74
      %105 = vmatprep.subr.mxu0 0.0
      %106 = vmatpush1.msra.mxu0 %v75
      %107 = vmatprep.subr.mxu0 0.0
      %108 = vmatpush1.msra.mxu0 %v76
      %109 = vmatprep.subr.mxu0 0.0
      %110 = vmatpush1.msra.mxu0 %v77
      %111 = vmatprep.subr.mxu0 0.0
      %112 = vmatpush1.msra.mxu0 %v78
      %113 = vmatprep.subr.mxu0 0.0
      %114 = vmatpush1.msra.mxu0 %v79
      %115 = vmatprep.subr.mxu0 0.0
      %116 = vmatpush1.msra.mxu0 %v80
      %117 = vmatprep.subr.mxu0 0.0
      %118 = vmatpush1.msra.mxu0 %v81
      %119 = vmatprep.subr.mxu0 0.0
      %120 = vmatpush1.msra.mxu0 %v82
      %121 = vmatprep.subr.mxu0 0.0
      %122 = vmatpush1.msra.mxu0 %v83
      %123 = vmatprep.subr.mxu0 0.0
      %124 = vmatpush1.msra.mxu0 0.0
      %125 = vmatprep.subr.mxu0 0.0
      %126 = vmatpush1.msra.mxu0 0.0
      %127 = vmatprep.subr.mxu0 0.0
      %128 = vmatpush1.msra.mxu0 0.0
      %129 = vmatprep.subr.mxu0 0.0
      %130 = vmatpush1.msra.mxu0 0.0
      %131 = vmatprep.subr.mxu0 0.0
      %132 = vmatpush1.msra.mxu0 0.0
      %133 = vmatprep.subr.mxu0 0.0
      %134 = vmatpush1.msra.mxu0 0.0
      %135 = vmatprep.subr.mxu0 0.0
      %136 = vmatpush1.msra.mxu0 0.0
      %137 = vmatprep.subr.mxu0 0.0
      %138 = vmatpush1.msra.mxu0 0.0
      %139 = vmatprep.subr.mxu0 0.0
      %140 = vmatpush1.msra.mxu0 0.0
      %141 = vmatprep.subr.mxu0 0.0
      %142 = vmatpush1.msra.mxu0 0.0
      %143 = vmatprep.subr.mxu0 0.0
      %144 = vmatpush1.msra.mxu0 0.0
      %145 = vmatprep.subr.mxu0 0.0
      %146 = vmatpush1.msra.mxu0 0.0
      %147 = vmatprep.subr.mxu0 0.0
      %148 = vmatpush1.msra.mxu0 0.0
      %149 = vmatprep.subr.mxu0 0.0
      %150 = vmatpush1.msra.mxu0 0.0
      %151 = vmatprep.subr.mxu0 0.0
      %152 = vmatpush1.msra.mxu0 0.0
      %153 = vmatprep.subr.mxu0 0.0
      %154 = vmatpush1.msra.mxu0 0.0
      %155 = vmatprep.mubr.f32.mxu0 0.0
      %156 = vmatmul.mubr.f32.gmra.mrb[0].mxu0 %v66
      %v157 = vpop.f32.mrb[0].mxu0
      %v158 = vadd.f32 %v89, %v157
      %v159 = vpop.f32.mrb[0].mxu0
      %160 = vmatprep.mubr.f32.mxu0 0.0
      %161 = vmatmul.mubr.f32.gmra.mrb[0].mxu0 %v67
      %v162 = vpop.f32.mrb[0].mxu0
      %v163 = vadd.f32 %v89, %v162
      %v164 = vpop.f32.mrb[0].mxu0
      %165 = vdwg.mxu0
      %v166 = vxor.u32 %v158, 2147483648
      %v167 = vxor.u32 %v163, 2147483648
      %v168 = vmul.f32 %v166, 1.442695
      %v169 = vpow.pop %v168
      %v170 = vmul.f32 %v167, 1.442695
      %v171 = vpow.pop %v170
      %v172 = vadd.f32 %v169, 1.0
      %v173 = vadd.f32 %v171, 1.0
      %v174 = vrcp.pop %v172
      %v175 = vmul.f32 1.0, %v174
      %v176 = vrcp.pop %v173
      %v177 = vmul.f32 1.0, %v176
      %v178 = vmul.f32 %v158, %v175
      %v179 = vmul.f32 %v163, %v177
      %180 = vst [vmem:[#allocation2] sm:$0xff] %v178
      %181 = vst [vmem:[#allocation2 + $0x8] sm:$0xff] %v179
    $region37: #{tpu_custom_call.1} parent=1 // pred_fallthru
      _
    %v182 = vld [vmem:[#allocation2] sm:$0xff]
    %v183 = vld [vmem:[#allocation2 + $0x8] sm:$0xff]
    %v184 = vld [vmem:[#allocation8] sm:$0xff]
    %v185 = vld [vmem:[#allocation8 + $0x8] sm:$0xff]
    %v186 = vld [vmem:[#allocation8 + $0x10] sm:$0xff]
    %v187 = vld [vmem:[#allocation8 + $0x18] sm:$0xff]
    %v188 = vld [vmem:[#allocation8 + $0x20] sm:$0xff]
    %v189 = vld [vmem:[#allocation8 + $0x28] sm:$0xff]
    %v190 = vld [vmem:[#allocation8 + $0x30] sm:$0xff]
    %v191 = vld [vmem:[#allocation8 + $0x38] sm:$0xff]
    %v192 = vld [vmem:[#allocation8 + $0x40] sm:$0xff]
    %v193 = vld [vmem:[#allocation8 + $0x48] sm:$0xff]
    %v194 = vld [vmem:[#allocation8 + $0x50] sm:$0xff]
    %v195 = vld [vmem:[#allocation8 + $0x58] sm:$0xff]
    %v196 = vld [vmem:[#allocation8 + $0x60] sm:$0xff]
    %v197 = vld [vmem:[#allocation8 + $0x68] sm:$0xff]
    %v198 = vld [vmem:[#allocation8 + $0x70] sm:$0xff]
    %v199 = vld [vmem:[#allocation8 + $0x78] sm:$0xff]
    %v200 = vld [vmem:[%s4] sm:$0x1]
    %v202 = vlaneseq
    %v203 = vshrl.u32 %v202, 7
    %v204 = vsub.s32 0, %v203
    %v205 = vrot.slane %v200, %v204
    %207 = vmatprep.subr.mxu0 0.0
    %208 = vmatpush1.msra.mxu0 %v184
    %209 = vmatprep.subr.mxu0 0.0
    %210 = vmatpush1.msra.mxu0 %v185
    %211 = vmatprep.subr.mxu0 0.0
    %212 = vmatpush1.msra.mxu0 %v186
    %213 = vmatprep.subr.mxu0 0.0
    %214 = vmatpush1.msra.mxu0 %v187
    %215 = vmatprep.subr.mxu0 0.0
    %216 = vmatpush1.msra.mxu0 %v188
    %217 = vmatprep.subr.mxu0 0.0
    %218 = vmatpush1.msra.mxu0 %v189
    %219 = vmatprep.subr.mxu0 0.0
    %220 = vmatpush1.msra.mxu0 %v190
    %221 = vmatprep.subr.mxu0 0.0
    %222 = vmatpush1.msra.mxu0 %v191
    %223 = vmatprep.subr.mxu0 0.0
    %224 = vmatpush1.msra.mxu0 %v192
    %225 = vmatprep.subr.mxu0 0.0
    %226 = vmatpush1.msra.mxu0 %v193
    %227 = vmatprep.subr.mxu0 0.0
    %228 = vmatpush1.msra.mxu0 %v194
    %229 = vmatprep.subr.mxu0 0.0
    %230 = vmatpush1.msra.mxu0 %v195
    %231 = vmatprep.subr.mxu0 0.0
    %232 = vmatpush1.msra.mxu0 %v196
    %233 = vmatprep.subr.mxu0 0.0
    %234 = vmatpush1.msra.mxu0 %v197
    %235 = vmatprep.subr.mxu0 0.0
    %236 = vmatpush1.msra.mxu0 %v198
    %237 = vmatprep.subr.mxu0 0.0
    %238 = vmatpush1.msra.mxu0 %v199
    %239 = vmatprep.subr.mxu0 0.0
    %240 = vmatpush1.msra.mxu0 0.0
    %241 = vmatprep.subr.mxu0 0.0
    %242 = vmatpush1.msra.mxu0 0.0
    %243 = vmatprep.subr.mxu0 0.0
    %244 = vmatpush1.msra.mxu0 0.0
    %245 = vmatprep.subr.mxu0 0.0
    %246 = vmatpush1.msra.mxu0 0.0
    %247 = vmatprep.subr.mxu0 0.0
    %248 = vmatpush1.msra.mxu0 0.0
    %249 = vmatprep.subr.mxu0 0.0
    %250 = vmatpush1.msra.mxu0 0.0
    %251 = vmatprep.subr.mxu0 0.0
    %252 = vmatpush1.msra.mxu0 0.0
    %253 = vmatprep.subr.mxu0 0.0
    %254 = vmatpush1.msra.mxu0 0.0
    %255 = vmatprep.subr.mxu0 0.0
    %256 = vmatpush1.msra.mxu0 0.0
    %257 = vmatprep.subr.mxu0 0.0
    %258 = vmatpush1.msra.mxu0 0.0
    %259 = vmatprep.subr.mxu0 0.0
    %260 = vmatpush1.msra.mxu0 0.0
    %261 = vmatprep.subr.mxu0 0.0
    %262 = vmatpush1.msra.mxu0 0.0
    %263 = vmatprep.subr.mxu0 0.0
    %264 = vmatpush1.msra.mxu0 0.0
    %265 = vmatprep.subr.mxu0 0.0
    %266 = vmatpush1.msra.mxu0 0.0
    %267 = vmatprep.subr.mxu0 0.0
    %268 = vmatpush1.msra.mxu0 0.0
    %269 = vmatprep.subr.mxu0 0.0
    %270 = vmatpush1.msra.mxu0 0.0
    %271 = vmatprep.mubr.f32.mxu0 0.0
    %272 = vmatmul.mubr.f32.gmra.mrb[0].mxu0 %v182
    %v273 = vpop.f32.mrb[0].mxu0
    %v274 = vadd.f32 %v205, %v273
    %v275 = vpop.f32.mrb[0].mxu0
    %276 = vmatprep.mubr.f32.mxu0 0.0
    %277 = vmatmul.mubr.f32.gmra.mrb[0].mxu0 %v183
    %v278 = vpop.f32.mrb[0].mxu0
    %v279 = vadd.f32 %v205, %v278
    %v280 = vpop.f32.mrb[0].mxu0
    %281 = vdwg.mxu0
    %282 = vst [vmem:[#allocation9] sm:$0xff] %v274
    %283 = vst [vmem:[#allocation9 + $0x8] sm:$0xff] %v279
    // Predicated region
    $region38: #{tpu_custom_call.1} parent=1 // pred_check
      _
    $region39: #{tpu_custom_call.1} parent=1 // pred_check_branch
      %285 = sbr.rel (0) target = $region41
    $region40: #{tpu_custom_call.1} parent=1 // pred_region
      %s287 = ssub.s32 256, 256
      %288 = vsyncadd [#allocation5], %s287
      %s289 = sshll.u32 [#allocation9], 4
      %s290 = int_to_ptr.vmem [resolvable:$true] %s289
      %295 = dma.vmem_to_hbm [thread:$0]  %s290, 256, %s5, [#allocation5], 128, 128, 8
    $region41: #{tpu_custom_call.1} parent=1 // pred_fallthru
      _
    // Predicated region
    $region42: #{tpu_custom_call.1} parent=1 // pred_check
      _
    $region43: #{tpu_custom_call.1} parent=1 // pred_check_branch
      %297 = sbr.rel (0) target = $region45
    $region44: #{tpu_custom_call.1} parent=1 // pred_region
      %298 = dma.done [#allocation5], 256
    $region45: #{tpu_custom_call.1} parent=1 // pred_fallthru
      _
    %299 = vsyncpa [#allocation4], 1
    %300 = vsyncpa [#allocation7], 1
    %301 = vsyncpa [#allocation5], 1

</llo_original>
